<compile_context>
chip_gen: v7x
topology: tpu7x:2x2x1
jax: 0.10.0
libtpu: 0.0.40
codegen_flags: <defaults>
</compile_context>

<pallas_src>
import functools

import jax
import jax.numpy as jnp
from jax.experimental import pallas as pl
from jax.experimental.pallas import tpu as pltpu


def _round_up(a, b):
    return -(-a // b) * b


# ---------------------------------------------------------------------------
# Pass 1: per-channel sum / sum-of-squares of the bias-free conv output.
# ---------------------------------------------------------------------------
def _stats_kernel(taps_ref, w_ref, s1_ref, s2_ref):
    taps = taps_ref[...].astype(jnp.float32)          # (K, TN, TL)
    w = w_ref[...].astype(jnp.float32)                # (C_out, K)
    K, TN, TL = taps.shape
    C_out = w.shape[0]

    conv0 = jnp.zeros((TN, C_out, TL), jnp.float32)
    for k in range(K):                                # K is small and static
        conv0 = conv0 + w[:, k:k + 1][None, :, :] * taps[k][:, None, :]

    s1 = jnp.sum(jnp.sum(conv0, axis=0), axis=1, keepdims=True)          # (C_out, 1)
    s2 = jnp.sum(jnp.sum(conv0 * conv0, axis=0), axis=1, keepdims=True)  # (C_out, 1)
    s1_ref[...] = s1.reshape(s1_ref.shape)
    s2_ref[...] = s2.reshape(s2_ref.shape)


# ---------------------------------------------------------------------------
# Pass 2: conv -> folded BN affine -> ReLU -> 1x1 residual -> ReLU.
# ---------------------------------------------------------------------------
def _main_kernel(taps_ref, x_ref, p_ref, o_ref, *, kernel_size, in_channels):
    K, C_in = kernel_size, in_channels
    taps = taps_ref[...].astype(jnp.float32)           # (K, TN, TL)
    x = x_ref[...].astype(jnp.float32)                 # (TN, C_in, TL)
    p = p_ref[...].astype(jnp.float32)                 # (C_out, K + C_in + 3)
    TN, _, TL = x.shape
    C_out = p.shape[0]

    w = p[:, :K]                                       # shared conv filter
    rw = p[:, K:K + C_in]                              # 1x1 residual weight
    scale = p[:, K + C_in:K + C_in + 1][None, :, :]    # (1, C_out, 1) BN scale
    shift = p[:, K + C_in + 1:K + C_in + 2][None, :, :]  # BN shift (bias folded)
    rbias = p[:, K + C_in + 2:K + C_in + 3][None, :, :]  # residual bias

    # Causal dilated shared-weight conv (bias-free: the conv bias cancels
    # against the batch mean in training-mode BatchNorm).
    acc = jnp.zeros((TN, C_out, TL), jnp.float32)
    for k in range(K):
        acc = acc + w[:, k:k + 1][None, :, :] * taps[k][:, None, :]

    # BatchNorm folded into a per-channel affine, then ReLU.
    acc = jnp.maximum(scale * acc + shift, 0.0)

    # Residual 1x1 conv, accumulated into the same buffer, then final ReLU.
    # TODO(synk): route these MACs through the MXU when K + C_in grows (>= ~8).
    acc = acc + rbias
    for c in range(C_in):
        acc = acc + rw[:, c:c + 1][None, :, :] * x[:, c, :][:, None, :]

    o_ref[...] = jnp.maximum(acc, 0.0).astype(o_ref.dtype)


# ---------------------------------------------------------------------------
# Wrapper
# ---------------------------------------------------------------------------
def shared_param_tcn_block(x, shared_weight, conv_bias, gamma, beta,
                           res_weight, res_bias, *, kernel_size, dilation,
                           eps=1e-5):
    """Forward of SharedParamTCNBlock (training-mode BatchNorm statistics)."""
    del conv_bias  # cancels exactly against the batch mean in training-mode BN
    N, C_in, L = x.shape
    C_out = shared_weight.shape[0]
    K = kernel_size
    P = (K - 1) * dilation
    out_dtype = x.dtype

    # Residual: nn.Identity when in_channels == out_channels.
    if res_weight is None:
        rw = jnp.eye(C_out, dtype=jnp.float32)
        rb = jnp.zeros((C_out,), jnp.float32)
    else:
        rw = res_weight.reshape(C_out, C_in).astype(jnp.float32)
        rb = res_bias.reshape(C_out).astype(jnp.float32)

    w2 = shared_weight.reshape(C_out, K).astype(jnp.float32)

    # ---- tile sizes: lane-dense length tiles, no batch padding (exact stats) ----
    LANE = 128
    L_pad = _round_up(L, LANE)
    TL = next(t for t in (1024, 512, 256, 128) if L_pad % t == 0)
    TN = 8 if N % 8 == 0 else N
    GN, GL = N // TN, L_pad // TL

    # ---- wrapper-side prep (cheap XLA glue): causal taps + zero length pad ----
    s = jnp.sum(x.astype(jnp.float32), axis=1)                   # (N, L)
    s_causal = jnp.pad(s, ((0, 0), (P, 0)))                      # (N, L + P)
    taps = jnp.stack([s_causal[:, k * dilation:k * dilation + L]
                      for k in range(K)], axis=0)                # (K, N, L)
    taps = jnp.pad(taps, ((0, 0), (0, 0), (0, L_pad - L))).astype(x.dtype)
    x_p = jnp.pad(x, ((0, 0), (0, 0), (0, L_pad - L)))

    cparams = pltpu.CompilerParams(
        dimension_semantics=("parallel", "parallel"),
        vmem_limit_bytes=32 * 1024 * 1024)

    # ---- pass 1: per-channel moments of the bias-free conv ----
    s1p, s2p = pl.pallas_call(
        _stats_kernel,
        out_shape=(jax.ShapeDtypeStruct((GN, GL, C_out, 1), jnp.float32),
                   jax.ShapeDtypeStruct((GN, GL, C_out, 1), jnp.float32)),
        grid_spec=pltpu.PrefetchScalarGridSpec(
            num_scalar_prefetch=0,
            grid=(GN, GL),
            in_specs=[
                pl.BlockSpec((K, TN, TL), lambda i, j: (0, i, j)),
                pl.BlockSpec((C_out, K), lambda i, j: (0, 0)),
            ],
            out_specs=[
                pl.BlockSpec((1, 1, C_out, 1), lambda i, j: (i, j, 0, 0)),
                pl.BlockSpec((1, 1, C_out, 1), lambda i, j: (i, j, 0, 0)),
            ]),
        compiler_params=cparams,
    )(taps, w2)

    # ---- fold training-mode BN (biased variance) into a per-channel affine ----
    count = jnp.float32(N * L)
    S1 = jnp.sum(s1p, axis=(0, 1))[:, 0]                         # (C_out,)
    S2 = jnp.sum(s2p, axis=(0, 1))[:, 0]
    mean0 = S1 / count                                           # bias-free mean
    var = S2 / count - mean0 * mean0                             # bias-independent
    scale = gamma.astype(jnp.float32) / jnp.sqrt(var + eps)
    shift = beta.astype(jnp.float32) - scale * mean0

    # Pack all small per-channel params into one slab: [w | rw | scale | shift | rb].
    params = jnp.concatenate(
        [w2, rw, scale[:, None], shift[:, None], rb[:, None]], axis=1)

    kernel = functools.partial(_main_kernel, kernel_size=K, in_channels=C_in)
    out = pl.pallas_call(
        kernel,
        out_shape=jax.ShapeDtypeStruct((N, C_out, L_pad), out_dtype),
        grid_spec=pltpu.PrefetchScalarGridSpec(
            num_scalar_prefetch=0,
            grid=(GN, GL),
            in_specs=[
                pl.BlockSpec((K, TN, TL), lambda i, j: (0, i, j)),
                pl.BlockSpec((TN, C_in, TL), lambda i, j: (i, 0, j)),
                pl.BlockSpec((C_out, K + C_in + 3), lambda i, j: (0, 0)),
            ],
            out_specs=pl.BlockSpec((TN, C_out, TL), lambda i, j: (i, 0, j))),
        compiler_params=cparams,
    )(taps, x_p, params)

    return out[:, :, :L]


# ---------------------------------------------------------------------------
# Pure-JAX reference mirroring the PyTorch forward (training-mode BN).
# ---------------------------------------------------------------------------
def reference(x, shared_weight, conv_bias, gamma, beta, res_weight, res_bias,
              *, kernel_size, dilation, eps=1e-5):
    N, C_in, L = x.shape
    C_out = shared_weight.shape[0]
    P = (kernel_size - 1) * dilation
    xp = jnp.pad(x, ((0, 0), (0, 0), (P, 0)))
    s = xp.sum(axis=1)                                           # (N, L + P)
    conv = jnp.zeros((N, C_out, L)) + conv_bias[None, :, None]
    for k in range(kernel_size):
        conv = conv + shared_weight[:, 0, k][None, :, None] * \
            s[:, k * dilation:k * dilation + L][:, None, :]
    mean = conv.mean(axis=(0, 2), keepdims=True)
    var = ((conv - mean) ** 2).mean(axis=(0, 2), keepdims=True)
    bn = gamma[None, :, None] * (conv - mean) / jnp.sqrt(var + eps) \
        + beta[None, :, None]
    act = jnp.maximum(bn, 0.0)
    res = jnp.einsum('oc,ncl->nol', res_weight[:, :, 0], x) \
        + res_bias[None, :, None]
    return jnp.maximum(act + res, 0.0)


if __name__ == "__main__":
    def run_case(key, N, C_in, C_out, L, kernel_size, dilation):
        kx, kw, krw, krb = jax.random.split(key, 4)
        x = jax.random.normal(kx, (N, C_in, L), jnp.float32)
        shared_weight = jax.random.normal(kw, (C_out, 1, kernel_size),
                                          jnp.float32)
        conv_bias = jnp.zeros((C_out,), jnp.float32)      # SharedParamConv1d init
        gamma = jnp.ones((C_out,), jnp.float32)           # fresh BatchNorm1d
        beta = jnp.zeros((C_out,), jnp.float32)
        res_weight = 0.1 * jax.random.normal(krw, (C_out, C_in, 1), jnp.float32)
        res_bias = 0.1 * jax.random.normal(krb, (C_out,), jnp.float32)

        out = shared_param_tcn_block(
            x, shared_weight, conv_bias, gamma, beta, res_weight, res_bias,
            kernel_size=kernel_size, dilation=dilation)
        out = jax.block_until_ready(out)

        ref = reference(x, shared_weight, conv_bias, gamma, beta, res_weight,
                        res_bias, kernel_size=kernel_size, dilation=dilation)
        assert out.shape == ref.shape
        err = jnp.max(jnp.abs(out - ref))
        assert jnp.allclose(out, ref, atol=1e-3, rtol=1e-3), \
            f"max abs err {err}"

    key = jax.random.PRNGKey(0)
    k1, k2 = jax.random.split(key)
    # Small shape matching the module defaults.
    run_case(k1, N=2, C_in=4, C_out=8, L=16, kernel_size=3, dilation=2)
    # A shape that exercises multiple length tiles + lane padding.
    run_case(k2, N=8, C_in=4, C_out=8, L=300, kernel_size=3, dilation=4)

    print("KERNEL_OK")
</pallas_src>

<mosaic_0001>
module attributes {stable_mosaic.version = 11 : i64} {
  func.func @_stats_kernel(%arg0: i32, %arg1: i32, %arg2: memref<3x2x128xf32, #tpu.memory_space<vmem>>, %arg3: memref<8x3xf32, #tpu.memory_space<vmem>>, %arg4: memref<1x1x8x1xf32, #tpu.memory_space<vmem>>, %arg5: memref<1x1x8x1xf32, #tpu.memory_space<vmem>>) attributes {dimension_semantics = [#tpu.dimension_semantics<parallel>, #tpu.dimension_semantics<parallel>], iteration_bounds = array<i64: 1, 1>, scalar_prefetch = 0 : i64, scratch_operands = 0 : i64, tpu.core_type = #tpu.core_type<tc>, window_params = [{transform_indices = @transform_0, window_bounds = array<i64: 3, 2, 128>}, {pipeline_mode = #tpu.pipeline_mode<synchronous>, transform_indices = @transform_1, window_bounds = array<i64: 8, 3>}, {transform_indices = @transform_2, window_bounds = array<i64: 1, 1, 8, 1>}, {transform_indices = @transform_3, window_bounds = array<i64: 1, 1, 8, 1>}]} {
    %c0 = arith.constant 0 : index
    %c0_0 = arith.constant 0 : index
    %c0_1 = arith.constant 0 : index
    %0 = vector.load %arg2[%c0, %c0_0, %c0_1] : memref<3x2x128xf32, #tpu.memory_space<vmem>>, vector<3x2x128xf32>
    %c0_2 = arith.constant 0 : index
    %c0_3 = arith.constant 0 : index
    %1 = vector.load %arg3[%c0_2, %c0_3] : memref<8x3xf32, #tpu.memory_space<vmem>>, vector<8x3xf32>
    %cst = arith.constant 0.000000e+00 : f32
    %2 = vector.broadcast %cst : f32 to vector<2x8x128xf32>
    %3 = vector.extract_strided_slice %1 {offsets = [0, 0], sizes = [8, 1], strides = [1, 1]} : vector<8x3xf32> to vector<8x1xf32>
    %4 = vector.shape_cast %3 : vector<8x1xf32> to vector<1x8x1xf32>
    %5 = vector.extract_strided_slice %0 {offsets = [0, 0, 0], sizes = [1, 2, 128], strides = [1, 1, 1]} : vector<3x2x128xf32> to vector<1x2x128xf32>
    %6 = vector.shape_cast %5 : vector<1x2x128xf32> to vector<2x128xf32>
    %7 = vector.shape_cast %6 : vector<2x128xf32> to vector<2x1x128xf32>
    %8 = vector.broadcast %4 : vector<1x8x1xf32> to vector<2x8x128xf32>
    %9 = vector.broadcast %7 : vector<2x1x128xf32> to vector<2x8x128xf32>
    %10 = arith.mulf %8, %9 : vector<2x8x128xf32>
    %11 = arith.addf %2, %10 : vector<2x8x128xf32>
    %12 = vector.extract_strided_slice %1 {offsets = [0, 1], sizes = [8, 1], strides = [1, 1]} : vector<8x3xf32> to vector<8x1xf32>
    %13 = vector.shape_cast %12 : vector<8x1xf32> to vector<1x8x1xf32>
    %14 = vector.extract_strided_slice %0 {offsets = [1, 0, 0], sizes = [1, 2, 128], strides = [1, 1, 1]} : vector<3x2x128xf32> to vector<1x2x128xf32>
    %15 = vector.shape_cast %14 : vector<1x2x128xf32> to vector<2x128xf32>
    %16 = vector.shape_cast %15 : vector<2x128xf32> to vector<2x1x128xf32>
    %17 = vector.broadcast %13 : vector<1x8x1xf32> to vector<2x8x128xf32>
    %18 = vector.broadcast %16 : vector<2x1x128xf32> to vector<2x8x128xf32>
    %19 = arith.mulf %17, %18 : vector<2x8x128xf32>
    %20 = arith.addf %11, %19 : vector<2x8x128xf32>
    %21 = vector.extract_strided_slice %1 {offsets = [0, 2], sizes = [8, 1], strides = [1, 1]} : vector<8x3xf32> to vector<8x1xf32>
    %22 = vector.shape_cast %21 : vector<8x1xf32> to vector<1x8x1xf32>
    %23 = vector.extract_strided_slice %0 {offsets = [2, 0, 0], sizes = [1, 2, 128], strides = [1, 1, 1]} : vector<3x2x128xf32> to vector<1x2x128xf32>
    %24 = vector.shape_cast %23 : vector<1x2x128xf32> to vector<2x128xf32>
    %25 = vector.shape_cast %24 : vector<2x128xf32> to vector<2x1x128xf32>
    %26 = vector.broadcast %22 : vector<1x8x1xf32> to vector<2x8x128xf32>
    %27 = vector.broadcast %25 : vector<2x1x128xf32> to vector<2x8x128xf32>
    %28 = arith.mulf %26, %27 : vector<2x8x128xf32>
    %29 = arith.addf %20, %28 : vector<2x8x128xf32>
    %cst_4 = arith.constant dense<0.000000e+00> : vector<8x128xf32>
    %30 = vector.multi_reduction <add>, %29, %cst_4 [0] : vector<2x8x128xf32> to vector<8x128xf32>
    %cst_5 = arith.constant dense<0.000000e+00> : vector<8xf32>
    %31 = vector.multi_reduction <add>, %30, %cst_5 [1] : vector<8x128xf32> to vector<8xf32>
    %32 = vector.shape_cast %31 : vector<8xf32> to vector<8x1xf32>
    %33 = arith.mulf %29, %29 : vector<2x8x128xf32>
    %cst_6 = arith.constant dense<0.000000e+00> : vector<8x128xf32>
    %34 = vector.multi_reduction <add>, %33, %cst_6 [0] : vector<2x8x128xf32> to vector<8x128xf32>
    %cst_7 = arith.constant dense<0.000000e+00> : vector<8xf32>
    %35 = vector.multi_reduction <add>, %34, %cst_7 [1] : vector<8x128xf32> to vector<8xf32>
    %36 = vector.shape_cast %35 : vector<8xf32> to vector<8x1xf32>
    %37 = vector.shape_cast %32 : vector<8x1xf32> to vector<1x1x8x1xf32>
    %c0_8 = arith.constant 0 : index
    %c0_9 = arith.constant 0 : index
    %c0_10 = arith.constant 0 : index
    %c0_11 = arith.constant 0 : index
    %38 = vector.load %arg4[%c0_8, %c0_9, %c0_10, %c0_11] : memref<1x1x8x1xf32, #tpu.memory_space<vmem>>, vector<1x1x8x1xf32>
    tpu.vector_store %arg4[%c0_8, %c0_9, %c0_10, %c0_11], %37 {strides = array<i32>} : memref<1x1x8x1xf32, #tpu.memory_space<vmem>>, vector<1x1x8x1xf32>,
    %39 = vector.shape_cast %36 : vector<8x1xf32> to vector<1x1x8x1xf32>
    %c0_12 = arith.constant 0 : index
    %c0_13 = arith.constant 0 : index
    %c0_14 = arith.constant 0 : index
    %c0_15 = arith.constant 0 : index
    %40 = vector.load %arg5[%c0_12, %c0_13, %c0_14, %c0_15] : memref<1x1x8x1xf32, #tpu.memory_space<vmem>>, vector<1x1x8x1xf32>
    tpu.vector_store %arg5[%c0_12, %c0_13, %c0_14, %c0_15], %39 {strides = array<i32>} : memref<1x1x8x1xf32, #tpu.memory_space<vmem>>, vector<1x1x8x1xf32>,
    return
  }
  func.func @transform_0(%arg0: i32, %arg1: i32) -> (i32, i32, i32) {
    %c0_i32 = arith.constant 0 : i32
    %c0_i32_0 = arith.constant 0 : i32
    return %c0_i32, %arg0, %arg1 : i32, i32, i32
  }
  func.func @transform_1(%arg0: i32, %arg1: i32) -> (i32, i32) {
    %c0_i32 = arith.constant 0 : i32
    %c0_i32_0 = arith.constant 0 : i32
    %c0_i32_1 = arith.constant 0 : i32
    return %c0_i32, %c0_i32_0 : i32, i32
  }
  func.func @transform_2(%arg0: i32, %arg1: i32) -> (i32, i32, i32, i32) {
    %c0_i32 = arith.constant 0 : i32
    %c0_i32_0 = arith.constant 0 : i32
    %c0_i32_1 = arith.constant 0 : i32
    return %arg0, %arg1, %c0_i32, %c0_i32_0 : i32, i32, i32, i32
  }
  func.func @transform_3(%arg0: i32, %arg1: i32) -> (i32, i32, i32, i32) {
    %c0_i32 = arith.constant 0 : i32
    %c0_i32_0 = arith.constant 0 : i32
    %c0_i32_1 = arith.constant 0 : i32
    return %arg0, %arg1, %c0_i32, %c0_i32_0 : i32, i32, i32, i32
  }
}

</mosaic_0001>

<llo_original>
// kernel: tpu_custom_call.1
$region0: #{tpu_custom_call.1}
  #allocation0 [shape = 'u32[]', space=smem, size = 0x4, offset = 0x4, fixed_abs, tag = 'smem constant byte address 0x4 - core index']
  #allocation1 [shape = 'u32[144,128]{1,0:T(1,128)}', space=vmem, size = 0x12000, scoped, tag = 'internal scratch']
  %s0 = inlined_call_operand.vmem [shape: f32[3,2,128], index: 0, kind: input, shape index: {}]
  %s1 = inlined_call_operand.vmem [shape: f32[8,3], index: 1, kind: input, shape index: {}]
  %s2 = inlined_call_operand.vmem [shape: f32[1,1,8,1], index: 2, kind: output, shape index: {0}]
  %s3 = inlined_call_operand.vmem [shape: f32[1,1,8,1], index: 3, kind: output, shape index: {1}]
  %4 = xla_tuple %s2, %s3
  %s5 = sld [smem:[#allocation0]]
  $region26: #{tpu_custom_call.1} parent=0
    _
  %s7 = ssub.s32 1, %s5
  %s8 = scalar_select 0, %s7, %s5
  // Predicated region
  $region2: #{tpu_custom_call.1} parent=0 // pred_check
    _
  $region3: #{tpu_custom_call.1} parent=0 // pred_check_branch
    %10 = sbr.rel (0) target = $region5
  $region4: #{tpu_custom_call.1} parent=0 // pred_region
    _
  $region5: #{tpu_custom_call.1} parent=0 // pred_fallthru
    _
  // Predicated region
  $region6: #{tpu_custom_call.1} parent=0 // pred_check
    _
  $region7: #{tpu_custom_call.1} parent=0 // pred_check_branch
    %12 = sbr.rel (0) target = $region9
  $region8: #{tpu_custom_call.1} parent=0 // pred_region
    _
  $region9: #{tpu_custom_call.1} parent=0 // pred_fallthru
    _
  %v13 = vld [vmem:[%s0] sm:$0x3]
  %v14 = vld [vmem:[%s0 + $0x2] sm:$0x3]
  %v15 = vld [vmem:[%s0 + $0x4] sm:$0x3]
  %v16 = vld [vmem:[%s1] sm:$0xff]
  %v19 = vunpack.c.l.s4 1966171168
  %v20 = vunpack.c.0.s8 %v19
  %v21 = vlaneseq
  %v22 = vshrl.u32 %v21, 7
  %v23 = vsub.s32 %v20, %v22
  %v24 = vrot.slane %v13, %v23
  %v25 = vcombine.high %v24, %v24
  %v27 = vunpack.c.l.s4 1966171168
  %v28 = vunpack.c.0.s8 %v27
  %v29 = vlaneseq
  %v30 = vshrl.u32 %v29, 7
  %v31 = vsub.s32 %v28, %v30
  %v32 = vrot.slane %v24, %v31
  %v34 = vunpack.c.l.s4 1966171168
  %v35 = vunpack.c.0.s8 %v34
  %v36 = vlaneseq
  %v37 = vshrl.u32 %v36, 7
  %v38 = vsub.s32 %v35, %v37
  %v39 = vrot.slane %v25, %v38
  %41 = vset.pattern.permute.xlu0 0
  %42 = vperm.xlu0 %41, %v16
  %v43 = vpop.permute.xlu0 %42
  %v45 = vlaneseq
  %v46 = vshrl.u32 %v45, 7
  %v47 = vsub.s32 0, %v46
  %v48 = vrot.slane %v32, %v47
  %v49 = vlaneseq
  %v50 = vshrl.u32 %v49, 7
  %v51 = vsub.s32 0, %v50
  %v52 = vrot.slane %v39, %v51
  %v55 = vmul.f32 %v43, %v48
  %v56 = vmul.f32 %v43, %v52
  %v57 = vadd.f32 %v55, 0.0
  %v58 = vadd.f32 %v56, 0.0
  %v61 = vunpack.c.l.s4 1966171168
  %v62 = vunpack.c.0.s8 %v61
  %v63 = vlaneseq
  %v64 = vshrl.u32 %v63, 7
  %v65 = vsub.s32 %v62, %v64
  %v66 = vrot.slane %v14, %v65
  %v67 = vcombine.high %v66, %v66
  %v69 = vunpack.c.l.s4 1966171168
  %v70 = vunpack.c.0.s8 %v69
  %v71 = vlaneseq
  %v72 = vshrl.u32 %v71, 7
  %v73 = vsub.s32 %v70, %v72
  %v74 = vrot.slane %v66, %v73
  %v76 = vunpack.c.l.s4 1966171168
  %v77 = vunpack.c.0.s8 %v76
  %v78 = vlaneseq
  %v79 = vshrl.u32 %v78, 7
  %v80 = vsub.s32 %v77, %v79
  %v81 = vrot.slane %v67, %v80
  %82 = vset.pattern.permute.xlu0 1
  %83 = vperm.xlu0 %82, %v16
  %v84 = vpop.permute.xlu0 %83
  %v86 = vlaneseq
  %v87 = vshrl.u32 %v86, 7
  %v88 = vsub.s32 0, %v87
  %v89 = vrot.slane %v74, %v88
  %v90 = vlaneseq
  %v91 = vshrl.u32 %v90, 7
  %v92 = vsub.s32 0, %v91
  %v93 = vrot.slane %v81, %v92
  %v96 = vmul.f32 %v84, %v89
  %v97 = vmul.f32 %v84, %v93
  %v98 = vadd.f32 %v57, %v96
  %v99 = vadd.f32 %v58, %v97
  %v102 = vunpack.c.l.s4 1966171168
  %v103 = vunpack.c.0.s8 %v102
  %v104 = vlaneseq
  %v105 = vshrl.u32 %v104, 7
  %v106 = vsub.s32 %v103, %v105
  %v107 = vrot.slane %v15, %v106
  %v108 = vcombine.high %v107, %v107
  %v110 = vunpack.c.l.s4 1966171168
  %v111 = vunpack.c.0.s8 %v110
  %v112 = vlaneseq
  %v113 = vshrl.u32 %v112, 7
  %v114 = vsub.s32 %v111, %v113
  %v115 = vrot.slane %v107, %v114
  %v117 = vunpack.c.l.s4 1966171168
  %v118 = vunpack.c.0.s8 %v117
  %v119 = vlaneseq
  %v120 = vshrl.u32 %v119, 7
  %v121 = vsub.s32 %v118, %v120
  %v122 = vrot.slane %v108, %v121
  %123 = vset.pattern.permute.xlu0 2
  %124 = vperm.xlu0 %123, %v16
  %v125 = vpop.permute.xlu0 %124
  %v127 = vlaneseq
  %v128 = vshrl.u32 %v127, 7
  %v129 = vsub.s32 0, %v128
  %v130 = vrot.slane %v115, %v129
  %v131 = vlaneseq
  %v132 = vshrl.u32 %v131, 7
  %v133 = vsub.s32 0, %v132
  %v134 = vrot.slane %v122, %v133
  %v137 = vmul.f32 %v125, %v130
  %v138 = vmul.f32 %v125, %v134
  %v139 = vadd.f32 %v98, %v137
  %v140 = vadd.f32 %v99, %v138
  %v141 = vadd.f32 %v139, %v140
  %142 = vadd.xlane.f32.xlu0 %v141
  %v143 = vpop.xlane.xlu0 %142
  %v144 = vmul.f32 %v139, %v139
  %v145 = vmul.f32 %v140, %v140
  %v146 = vadd.f32 %v144, %v145
  %147 = vadd.xlane.f32.xlu0 %v146
  %v148 = vpop.xlane.xlu0 %147
  %vm149 = vcmask 7168
  %150 = vst.msk [vmem:[%s2] sm:$0xff] %vm149, %v143
  %151 = vst.msk [vmem:[%s3] sm:$0xff] %vm149, %v148
  // Predicated region
  $region10: #{tpu_custom_call.1} parent=0 // pred_check
    _
  $region11: #{tpu_custom_call.1} parent=0 // pred_check_branch
    %153 = sbr.rel (0) target = $region13
  $region12: #{tpu_custom_call.1} parent=0 // pred_region
    _
  $region13: #{tpu_custom_call.1} parent=0 // pred_fallthru
    _
  // Predicated region
  $region14: #{tpu_custom_call.1} parent=0 // pred_check
    _
  $region15: #{tpu_custom_call.1} parent=0 // pred_check_branch
    %155 = sbr.rel (0) target = $region17
  $region16: #{tpu_custom_call.1} parent=0 // pred_region
    _
  $region17: #{tpu_custom_call.1} parent=0 // pred_fallthru
    _
  // Predicated region
  $region18: #{tpu_custom_call.1} parent=0 // pred_check
    _
  $region19: #{tpu_custom_call.1} parent=0 // pred_check_branch
    %157 = sbr.rel (0) target = $region21
  $region20: #{tpu_custom_call.1} parent=0 // pred_region
    _
  $region21: #{tpu_custom_call.1} parent=0 // pred_fallthru
    _
  // Predicated region
  $region22: #{tpu_custom_call.1} parent=0 // pred_check
    _
  $region23: #{tpu_custom_call.1} parent=0 // pred_check_branch
    %159 = sbr.rel (0) target = $region25
  $region24: #{tpu_custom_call.1} parent=0 // pred_region
    _
  $region25: #{tpu_custom_call.1} parent=0 // pred_fallthru
    _

</llo_original>
